<compile_context>
chip_gen: v5e
topology: v5e:2x2
jax: 0.10.0
libtpu: 0.0.40
codegen_flags: <defaults>
</compile_context>

<pallas_src>
import functools

import jax
import jax.numpy as jnp
from jax.experimental import pallas as pl
from jax.experimental.pallas import tpu as pltpu

LANE = 128
SUBLANE = 8


def _round_up(v, m):
    return (v + m - 1) // m * m


def _pad2(a, rows, cols):
    return jnp.zeros((rows, cols), a.dtype).at[: a.shape[0], : a.shape[1]].set(a)


# ----------------------------------------------------------------------------
# Fused Pallas kernel: all GIN layers + global_add_pool + readout MLP
# ----------------------------------------------------------------------------
def fused_gin_kernel(adj_ref, x_ref, w1_ref, b1_ref, w2_ref, b2_ref,
                     pool_ref, w3_ref, b3_ref, w4_ref, b4_ref, o_ref):
    """Everything VMEM-resident; layer loop is statically unrolled."""
    num_layers = w1_ref.shape[0]
    adj = adj_ref[...]                       # [NP, NP]  bf16, A + I (eps=0 self term)
    x = x_ref[...]                           # [NP, F]   bf16
    for l in range(num_layers):              # static unroll
        # Neighbor aggregation + self term on the MXU.
        agg = jnp.dot(adj, x, preferred_element_type=jnp.float32)
        # MLP hidden layer: Linear (eval BN folded into w1/b1) -> ReLU.
        h = jnp.dot(agg.astype(jnp.bfloat16), w1_ref[l],
                    preferred_element_type=jnp.float32) + b1_ref[l]
        h = jnp.maximum(h, 0.0)
        # MLP plain last layer + outer .relu() from Net.forward.
        h = jnp.dot(h.astype(jnp.bfloat16), w2_ref[l],
                    preferred_element_type=jnp.float32) + b2_ref[l]
        x = jnp.maximum(h, 0.0).astype(jnp.bfloat16)

    # global_add_pool as one-hot matmul, consuming x directly from VMEM.
    pooled = jnp.dot(pool_ref[...], x, preferred_element_type=jnp.float32)
    h = jnp.dot(pooled.astype(jnp.bfloat16), w3_ref[...],
                preferred_element_type=jnp.float32) + b3_ref[...]
    h = jnp.maximum(h, 0.0)
    # TODO(synk): dropout(p=0.5) is identity in eval mode; not emitted.
    o_ref[...] = jnp.dot(h.astype(jnp.bfloat16), w4_ref[...],
                         preferred_element_type=jnp.float32) + b4_ref[...]


# ----------------------------------------------------------------------------
# Wrapper: builds padded dense operands, folds BN, calls the fused kernel once
# ----------------------------------------------------------------------------
@functools.partial(jax.jit, static_argnames=("num_graphs",))
def net_forward(x, edge_index, batch, params, *, num_graphs):
    n, c_in = x.shape
    hidden = params["convs"][0]["w2"].shape[1]
    c_out = params["mlp"]["w4"].shape[1]

    npad = _round_up(n, LANE)                   # node axis is a lane axis of A and P
    fpad = _round_up(max(c_in, hidden), LANE)   # common feature width
    opad = _round_up(c_out, LANE)
    gpad = _round_up(num_graphs, SUBLANE)

    # Dense adjacency with self loops folded in:
    #   (A + I)[i, j] = [i == j] + #edges j -> i   (source_to_target, aggr='add')
    adj = jnp.zeros((npad, npad), jnp.float32)
    adj = adj.at[edge_index[1], edge_index[0]].add(1.0)
    adj = adj + jnp.eye(npad, dtype=jnp.float32)
    # Pooling one-hot: P[g, i] = 1 iff batch[i] == g  (padded rows/cols are zero,
    # so padded-node rows never reach the pooled output).
    pool = jnp.zeros((gpad, npad), jnp.float32)
    pool = pool.at[batch, jnp.arange(n)].set(1.0)

    x_p = _pad2(x, npad, fpad)

    # Per-layer weights: fold eval-mode BatchNorm into the first Linear, pad,
    # and stack along a leading layer axis.
    w1s, b1s, w2s, b2s = [], [], [], []
    for layer in params["convs"]:
        inv_std = 1.0 / jnp.sqrt(layer["bn_var"] + layer["bn_eps"])
        scale = layer["bn_gamma"] * inv_std                      # [H]
        shift = layer["bn_beta"] - layer["bn_mean"] * scale      # [H]
        w1 = layer["w1"] * scale[None, :]
        b1 = layer["b1"] * scale + shift
        w1s.append(_pad2(w1, fpad, fpad))
        b1s.append(_pad2(b1[None, :], 1, fpad))
        w2s.append(_pad2(layer["w2"], fpad, fpad))
        b2s.append(_pad2(layer["b2"][None, :], 1, fpad))
    w1s = jnp.stack(w1s)
    b1s = jnp.stack(b1s)
    w2s = jnp.stack(w2s)
    b2s = jnp.stack(b2s)

    w3 = _pad2(params["mlp"]["w3"], fpad, fpad)
    b3 = _pad2(params["mlp"]["b3"][None, :], 1, fpad)
    w4 = _pad2(params["mlp"]["w4"], fpad, opad)
    b4 = _pad2(params["mlp"]["b4"][None, :], 1, opad)

    bf16 = jnp.bfloat16
    vmem = lambda: pl.BlockSpec(memory_space=pltpu.MemorySpace.VMEM)

    out = pl.pallas_call(
        fused_gin_kernel,
        out_shape=jax.ShapeDtypeStruct((gpad, opad), jnp.float32),
        in_specs=[vmem() for _ in range(11)],
        out_specs=vmem(),
    )(adj.astype(bf16), x_p.astype(bf16),
      w1s.astype(bf16), b1s, w2s.astype(bf16), b2s,
      pool.astype(bf16), w3.astype(bf16), b3, w4.astype(bf16), b4)

    return out[:num_graphs, :c_out]


# ----------------------------------------------------------------------------
# Pure-JAX f32 reference (mirrors the PyTorch forward, eval mode)
# ----------------------------------------------------------------------------
def net_forward_ref(x, edge_index, batch, params, num_graphs):
    n = x.shape[0]
    adj = jnp.zeros((n, n), jnp.float32).at[edge_index[1], edge_index[0]].add(1.0)
    h = x
    for layer in params["convs"]:
        agg = h + adj @ h                                  # GIN aggregation, eps=0
        z = agg @ layer["w1"] + layer["b1"]
        inv_std = 1.0 / jnp.sqrt(layer["bn_var"] + layer["bn_eps"])
        z = (z - layer["bn_mean"]) * inv_std * layer["bn_gamma"] + layer["bn_beta"]
        z = jnp.maximum(z, 0.0)
        z = z @ layer["w2"] + layer["b2"]
        h = jnp.maximum(z, 0.0)                            # outer .relu()
    pooled = jax.ops.segment_sum(h, batch, num_segments=num_graphs)
    z = jnp.maximum(pooled @ params["mlp"]["w3"] + params["mlp"]["b3"], 0.0)
    return z @ params["mlp"]["w4"] + params["mlp"]["b4"]


# ----------------------------------------------------------------------------
# Deterministic parameter construction (synthetic, matches __init__ shapes)
# ----------------------------------------------------------------------------
def init_params(key, in_channels, hidden_channels, out_channels, num_layers):
    params = {"convs": []}
    c_in = in_channels
    for _ in range(num_layers):
        key, k1, k2, k3, k4 = jax.random.split(key, 5)
        layer = {
            "w1": jax.random.normal(k1, (c_in, hidden_channels), jnp.float32) * 0.1,
            "b1": jax.random.normal(k3, (hidden_channels,), jnp.float32) * 0.01,
            # General eval-mode BatchNorm1d statistics / affine parameters.
            "bn_gamma": jnp.ones((hidden_channels,), jnp.float32),
            "bn_beta": jnp.zeros((hidden_channels,), jnp.float32),
            "bn_mean": jnp.zeros((hidden_channels,), jnp.float32),
            "bn_var": jnp.ones((hidden_channels,), jnp.float32),
            "bn_eps": 1e-5,
            "w2": jax.random.normal(k2, (hidden_channels, hidden_channels),
                                    jnp.float32) * 0.1,
            "b2": jax.random.normal(k4, (hidden_channels,), jnp.float32) * 0.01,
        }
        params["convs"].append(layer)
        c_in = hidden_channels
    key, k5, k6 = jax.random.split(key, 3)
    params["mlp"] = {
        "w3": jax.random.normal(k5, (hidden_channels, hidden_channels),
                                jnp.float32) * 0.1,
        "b3": jnp.zeros((hidden_channels,), jnp.float32),
        "w4": jax.random.normal(k6, (hidden_channels, out_channels),
                                jnp.float32) * 0.1,
        "b4": jnp.zeros((out_channels,), jnp.float32),
    }
    return params


# ----------------------------------------------------------------------------
# Main
# ----------------------------------------------------------------------------
if __name__ == "__main__":
    IN_CHANNELS = 8
    HIDDEN = 32
    OUT_CHANNELS = 4
    NUM_LAYERS = 3
    NUM_NODES = 16
    NUM_EDGES = 40
    NUM_GRAPHS = 2

    key = jax.random.PRNGKey(0)
    kx, ke, kp = jax.random.split(key, 3)

    x = jax.random.normal(kx, (NUM_NODES, IN_CHANNELS), jnp.float32)
    edge_index = jax.random.randint(ke, (2, NUM_EDGES), 0, NUM_NODES, jnp.int32)
    # nodes 0..7 -> graph 0, nodes 8..15 -> graph 1
    batch = jnp.concatenate([jnp.zeros(8, jnp.int32), jnp.ones(8, jnp.int32)])

    params = init_params(kp, IN_CHANNELS, HIDDEN, OUT_CHANNELS, NUM_LAYERS)

    out = net_forward(x, edge_index, batch, params, num_graphs=NUM_GRAPHS)
    out = jax.block_until_ready(out)
    assert out.shape == (NUM_GRAPHS, OUT_CHANNELS), out.shape

    # Correctness check against the pure-f32 reference (loose tolerance: the
    # kernel runs its matmuls in bf16 with f32 accumulation on the MXU).
    ref = net_forward_ref(x, edge_index, batch, params, NUM_GRAPHS)
    assert jnp.allclose(out, ref, rtol=0.1, atol=0.2), float(
        jnp.max(jnp.abs(out - ref)))

    print("KERNEL_OK")
</pallas_src>

<mosaic_0001>
module attributes {stable_mosaic.version = 11 : i64} {
  func.func @fused_gin_kernel(%arg0: memref<128x128xbf16, #tpu.memory_space<vmem>>, %arg1: memref<128x128xbf16, #tpu.memory_space<vmem>>, %arg2: memref<3x128x128xbf16, #tpu.memory_space<vmem>>, %arg3: memref<3x1x128xf32, #tpu.memory_space<vmem>>, %arg4: memref<3x128x128xbf16, #tpu.memory_space<vmem>>, %arg5: memref<3x1x128xf32, #tpu.memory_space<vmem>>, %arg6: memref<8x128xbf16, #tpu.memory_space<vmem>>, %arg7: memref<128x128xbf16, #tpu.memory_space<vmem>>, %arg8: memref<1x128xf32, #tpu.memory_space<vmem>>, %arg9: memref<128x128xbf16, #tpu.memory_space<vmem>>, %arg10: memref<1x128xf32, #tpu.memory_space<vmem>>, %arg11: memref<8x128xf32, #tpu.memory_space<vmem>>) attributes {dimension_semantics = [], scalar_prefetch = 0 : i64, scratch_operands = 0 : i64, tpu.core_type = #tpu.core_type<tc>} {
    %c0 = arith.constant 0 : index
    %c0_0 = arith.constant 0 : index
    %0 = vector.load %arg0[%c0, %c0_0] : memref<128x128xbf16, #tpu.memory_space<vmem>>, vector<128x128xbf16>
    %c0_1 = arith.constant 0 : index
    %c0_2 = arith.constant 0 : index
    %1 = vector.load %arg1[%c0_1, %c0_2] : memref<128x128xbf16, #tpu.memory_space<vmem>>, vector<128x128xbf16>
    %cst = arith.constant dense<0.000000e+00> : vector<128x128xf32>
    %2 = tpu.matmul %0, %1, %cst {dimension_numbers = #tpu.dot_dimension_numbers<[1], [0], [0], [1], [0, 0, 1, 1], [], []>} : vector<128x128xbf16>, vector<128x128xbf16>, vector<128x128xf32> -> vector<128x128xf32>
    %3 = arith.truncf %2 : vector<128x128xf32> to vector<128x128xbf16>
    %c0_3 = arith.constant 0 : index
    %c0_4 = arith.constant 0 : index
    %c0_5 = arith.constant 0 : index
    %4 = vector.load %arg2[%c0_3, %c0_4, %c0_5] : memref<3x128x128xbf16, #tpu.memory_space<vmem>>, vector<1x128x128xbf16>
    %5 = vector.shape_cast %4 : vector<1x128x128xbf16> to vector<128x128xbf16>
    %cst_6 = arith.constant dense<0.000000e+00> : vector<128x128xf32>
    %6 = tpu.matmul %3, %5, %cst_6 {dimension_numbers = #tpu.dot_dimension_numbers<[1], [0], [0], [1], [0, 0, 1, 1], [], []>} : vector<128x128xbf16>, vector<128x128xbf16>, vector<128x128xf32> -> vector<128x128xf32>
    %c0_7 = arith.constant 0 : index
    %c0_8 = arith.constant 0 : index
    %c0_9 = arith.constant 0 : index
    %7 = vector.load %arg3[%c0_7, %c0_8, %c0_9] : memref<3x1x128xf32, #tpu.memory_space<vmem>>, vector<1x1x128xf32>
    %8 = vector.shape_cast %7 : vector<1x1x128xf32> to vector<1x128xf32>
    %9 = vector.broadcast %8 : vector<1x128xf32> to vector<128x128xf32>
    %10 = arith.addf %6, %9 : vector<128x128xf32>
    %cst_10 = arith.constant 0.000000e+00 : f32
    %11 = vector.broadcast %cst_10 : f32 to vector<128x128xf32>
    %12 = arith.maximumf %10, %11 : vector<128x128xf32>
    %13 = arith.truncf %12 : vector<128x128xf32> to vector<128x128xbf16>
    %c0_11 = arith.constant 0 : index
    %c0_12 = arith.constant 0 : index
    %c0_13 = arith.constant 0 : index
    %14 = vector.load %arg4[%c0_11, %c0_12, %c0_13] : memref<3x128x128xbf16, #tpu.memory_space<vmem>>, vector<1x128x128xbf16>
    %15 = vector.shape_cast %14 : vector<1x128x128xbf16> to vector<128x128xbf16>
    %cst_14 = arith.constant dense<0.000000e+00> : vector<128x128xf32>
    %16 = tpu.matmul %13, %15, %cst_14 {dimension_numbers = #tpu.dot_dimension_numbers<[1], [0], [0], [1], [0, 0, 1, 1], [], []>} : vector<128x128xbf16>, vector<128x128xbf16>, vector<128x128xf32> -> vector<128x128xf32>
    %c0_15 = arith.constant 0 : index
    %c0_16 = arith.constant 0 : index
    %c0_17 = arith.constant 0 : index
    %17 = vector.load %arg5[%c0_15, %c0_16, %c0_17] : memref<3x1x128xf32, #tpu.memory_space<vmem>>, vector<1x1x128xf32>
    %18 = vector.shape_cast %17 : vector<1x1x128xf32> to vector<1x128xf32>
    %19 = vector.broadcast %18 : vector<1x128xf32> to vector<128x128xf32>
    %20 = arith.addf %16, %19 : vector<128x128xf32>
    %cst_18 = arith.constant 0.000000e+00 : f32
    %21 = vector.broadcast %cst_18 : f32 to vector<128x128xf32>
    %22 = arith.maximumf %20, %21 : vector<128x128xf32>
    %23 = arith.truncf %22 : vector<128x128xf32> to vector<128x128xbf16>
    %cst_19 = arith.constant dense<0.000000e+00> : vector<128x128xf32>
    %24 = tpu.matmul %0, %23, %cst_19 {dimension_numbers = #tpu.dot_dimension_numbers<[1], [0], [0], [1], [0, 0, 1, 1], [], []>} : vector<128x128xbf16>, vector<128x128xbf16>, vector<128x128xf32> -> vector<128x128xf32>
    %25 = arith.truncf %24 : vector<128x128xf32> to vector<128x128xbf16>
    %c1 = arith.constant 1 : index
    %c0_20 = arith.constant 0 : index
    %c0_21 = arith.constant 0 : index
    %26 = vector.load %arg2[%c1, %c0_20, %c0_21] : memref<3x128x128xbf16, #tpu.memory_space<vmem>>, vector<1x128x128xbf16>
    %27 = vector.shape_cast %26 : vector<1x128x128xbf16> to vector<128x128xbf16>
    %cst_22 = arith.constant dense<0.000000e+00> : vector<128x128xf32>
    %28 = tpu.matmul %25, %27, %cst_22 {dimension_numbers = #tpu.dot_dimension_numbers<[1], [0], [0], [1], [0, 0, 1, 1], [], []>} : vector<128x128xbf16>, vector<128x128xbf16>, vector<128x128xf32> -> vector<128x128xf32>
    %c1_23 = arith.constant 1 : index
    %c0_24 = arith.constant 0 : index
    %c0_25 = arith.constant 0 : index
    %29 = vector.load %arg3[%c1_23, %c0_24, %c0_25] : memref<3x1x128xf32, #tpu.memory_space<vmem>>, vector<1x1x128xf32>
    %30 = vector.shape_cast %29 : vector<1x1x128xf32> to vector<1x128xf32>
    %31 = vector.broadcast %30 : vector<1x128xf32> to vector<128x128xf32>
    %32 = arith.addf %28, %31 : vector<128x128xf32>
    %cst_26 = arith.constant 0.000000e+00 : f32
    %33 = vector.broadcast %cst_26 : f32 to vector<128x128xf32>
    %34 = arith.maximumf %32, %33 : vector<128x128xf32>
    %35 = arith.truncf %34 : vector<128x128xf32> to vector<128x128xbf16>
    %c1_27 = arith.constant 1 : index
    %c0_28 = arith.constant 0 : index
    %c0_29 = arith.constant 0 : index
    %36 = vector.load %arg4[%c1_27, %c0_28, %c0_29] : memref<3x128x128xbf16, #tpu.memory_space<vmem>>, vector<1x128x128xbf16>
    %37 = vector.shape_cast %36 : vector<1x128x128xbf16> to vector<128x128xbf16>
    %cst_30 = arith.constant dense<0.000000e+00> : vector<128x128xf32>
    %38 = tpu.matmul %35, %37, %cst_30 {dimension_numbers = #tpu.dot_dimension_numbers<[1], [0], [0], [1], [0, 0, 1, 1], [], []>} : vector<128x128xbf16>, vector<128x128xbf16>, vector<128x128xf32> -> vector<128x128xf32>
    %c1_31 = arith.constant 1 : index
    %c0_32 = arith.constant 0 : index
    %c0_33 = arith.constant 0 : index
    %39 = vector.load %arg5[%c1_31, %c0_32, %c0_33] : memref<3x1x128xf32, #tpu.memory_space<vmem>>, vector<1x1x128xf32>
    %40 = vector.shape_cast %39 : vector<1x1x128xf32> to vector<1x128xf32>
    %41 = vector.broadcast %40 : vector<1x128xf32> to vector<128x128xf32>
    %42 = arith.addf %38, %41 : vector<128x128xf32>
    %cst_34 = arith.constant 0.000000e+00 : f32
    %43 = vector.broadcast %cst_34 : f32 to vector<128x128xf32>
    %44 = arith.maximumf %42, %43 : vector<128x128xf32>
    %45 = arith.truncf %44 : vector<128x128xf32> to vector<128x128xbf16>
    %cst_35 = arith.constant dense<0.000000e+00> : vector<128x128xf32>
    %46 = tpu.matmul %0, %45, %cst_35 {dimension_numbers = #tpu.dot_dimension_numbers<[1], [0], [0], [1], [0, 0, 1, 1], [], []>} : vector<128x128xbf16>, vector<128x128xbf16>, vector<128x128xf32> -> vector<128x128xf32>
    %47 = arith.truncf %46 : vector<128x128xf32> to vector<128x128xbf16>
    %c2 = arith.constant 2 : index
    %c0_36 = arith.constant 0 : index
    %c0_37 = arith.constant 0 : index
    %48 = vector.load %arg2[%c2, %c0_36, %c0_37] : memref<3x128x128xbf16, #tpu.memory_space<vmem>>, vector<1x128x128xbf16>
    %49 = vector.shape_cast %48 : vector<1x128x128xbf16> to vector<128x128xbf16>
    %cst_38 = arith.constant dense<0.000000e+00> : vector<128x128xf32>
    %50 = tpu.matmul %47, %49, %cst_38 {dimension_numbers = #tpu.dot_dimension_numbers<[1], [0], [0], [1], [0, 0, 1, 1], [], []>} : vector<128x128xbf16>, vector<128x128xbf16>, vector<128x128xf32> -> vector<128x128xf32>
    %c2_39 = arith.constant 2 : index
    %c0_40 = arith.constant 0 : index
    %c0_41 = arith.constant 0 : index
    %51 = vector.load %arg3[%c2_39, %c0_40, %c0_41] : memref<3x1x128xf32, #tpu.memory_space<vmem>>, vector<1x1x128xf32>
    %52 = vector.shape_cast %51 : vector<1x1x128xf32> to vector<1x128xf32>
    %53 = vector.broadcast %52 : vector<1x128xf32> to vector<128x128xf32>
    %54 = arith.addf %50, %53 : vector<128x128xf32>
    %cst_42 = arith.constant 0.000000e+00 : f32
    %55 = vector.broadcast %cst_42 : f32 to vector<128x128xf32>
    %56 = arith.maximumf %54, %55 : vector<128x128xf32>
    %57 = arith.truncf %56 : vector<128x128xf32> to vector<128x128xbf16>
    %c2_43 = arith.constant 2 : index
    %c0_44 = arith.constant 0 : index
    %c0_45 = arith.constant 0 : index
    %58 = vector.load %arg4[%c2_43, %c0_44, %c0_45] : memref<3x128x128xbf16, #tpu.memory_space<vmem>>, vector<1x128x128xbf16>
    %59 = vector.shape_cast %58 : vector<1x128x128xbf16> to vector<128x128xbf16>
    %cst_46 = arith.constant dense<0.000000e+00> : vector<128x128xf32>
    %60 = tpu.matmul %57, %59, %cst_46 {dimension_numbers = #tpu.dot_dimension_numbers<[1], [0], [0], [1], [0, 0, 1, 1], [], []>} : vector<128x128xbf16>, vector<128x128xbf16>, vector<128x128xf32> -> vector<128x128xf32>
    %c2_47 = arith.constant 2 : index
    %c0_48 = arith.constant 0 : index
    %c0_49 = arith.constant 0 : index
    %61 = vector.load %arg5[%c2_47, %c0_48, %c0_49] : memref<3x1x128xf32, #tpu.memory_space<vmem>>, vector<1x1x128xf32>
    %62 = vector.shape_cast %61 : vector<1x1x128xf32> to vector<1x128xf32>
    %63 = vector.broadcast %62 : vector<1x128xf32> to vector<128x128xf32>
    %64 = arith.addf %60, %63 : vector<128x128xf32>
    %cst_50 = arith.constant 0.000000e+00 : f32
    %65 = vector.broadcast %cst_50 : f32 to vector<128x128xf32>
    %66 = arith.maximumf %64, %65 : vector<128x128xf32>
    %67 = arith.truncf %66 : vector<128x128xf32> to vector<128x128xbf16>
    %c0_51 = arith.constant 0 : index
    %c0_52 = arith.constant 0 : index
    %68 = vector.load %arg6[%c0_51, %c0_52] : memref<8x128xbf16, #tpu.memory_space<vmem>>, vector<8x128xbf16>
    %cst_53 = arith.constant dense<0.000000e+00> : vector<8x128xf32>
    %69 = tpu.matmul %68, %67, %cst_53 {dimension_numbers = #tpu.dot_dimension_numbers<[1], [0], [0], [1], [0, 0, 1, 1], [], []>} : vector<8x128xbf16>, vector<128x128xbf16>, vector<8x128xf32> -> vector<8x128xf32>
    %70 = arith.truncf %69 : vector<8x128xf32> to vector<8x128xbf16>
    %c0_54 = arith.constant 0 : index
    %c0_55 = arith.constant 0 : index
    %71 = vector.load %arg7[%c0_54, %c0_55] : memref<128x128xbf16, #tpu.memory_space<vmem>>, vector<128x128xbf16>
    %cst_56 = arith.constant dense<0.000000e+00> : vector<8x128xf32>
    %72 = tpu.matmul %70, %71, %cst_56 {dimension_numbers = #tpu.dot_dimension_numbers<[1], [0], [0], [1], [0, 0, 1, 1], [], []>} : vector<8x128xbf16>, vector<128x128xbf16>, vector<8x128xf32> -> vector<8x128xf32>
    %c0_57 = arith.constant 0 : index
    %c0_58 = arith.constant 0 : index
    %73 = vector.load %arg8[%c0_57, %c0_58] : memref<1x128xf32, #tpu.memory_space<vmem>>, vector<1x128xf32>
    %74 = vector.broadcast %73 : vector<1x128xf32> to vector<8x128xf32>
    %75 = arith.addf %72, %74 : vector<8x128xf32>
    %cst_59 = arith.constant 0.000000e+00 : f32
    %76 = vector.broadcast %cst_59 : f32 to vector<8x128xf32>
    %77 = arith.maximumf %75, %76 : vector<8x128xf32>
    %78 = arith.truncf %77 : vector<8x128xf32> to vector<8x128xbf16>
    %c0_60 = arith.constant 0 : index
    %c0_61 = arith.constant 0 : index
    %79 = vector.load %arg9[%c0_60, %c0_61] : memref<128x128xbf16, #tpu.memory_space<vmem>>, vector<128x128xbf16>
    %cst_62 = arith.constant dense<0.000000e+00> : vector<8x128xf32>
    %80 = tpu.matmul %78, %79, %cst_62 {dimension_numbers = #tpu.dot_dimension_numbers<[1], [0], [0], [1], [0, 0, 1, 1], [], []>} : vector<8x128xbf16>, vector<128x128xbf16>, vector<8x128xf32> -> vector<8x128xf32>
    %c0_63 = arith.constant 0 : index
    %c0_64 = arith.constant 0 : index
    %81 = vector.load %arg10[%c0_63, %c0_64] : memref<1x128xf32, #tpu.memory_space<vmem>>, vector<1x128xf32>
    %82 = vector.broadcast %81 : vector<1x128xf32> to vector<8x128xf32>
    %83 = arith.addf %80, %82 : vector<8x128xf32>
    %c0_65 = arith.constant 0 : index
    %c0_66 = arith.constant 0 : index
    %84 = vector.load %arg11[%c0_65, %c0_66] : memref<8x128xf32, #tpu.memory_space<vmem>>, vector<8x128xf32>
    tpu.vector_store %arg11[%c0_65, %c0_66], %83 {strides = array<i32>} : memref<8x128xf32, #tpu.memory_space<vmem>>, vector<8x128xf32>,
    return
  }
}

</mosaic_0001>

<llo_original>
// kernel: net_forward.1
$region0: #{net_forward.1}
  #allocation0 [shape = 'u32[]', space=smem, size = 0x4, offset = 0x4, fixed_abs, tag = 'smem constant byte address 0x4 - core index']
  #allocation1 [shape = 'u32[72,128]{1,0:T(1,128)}', space=vmem, size = 0x9000, scoped, tag = 'internal scratch']
  %s0 = inlined_call_operand.vmem [shape: bf16[128,128], index: 0, kind: input, shape index: {}]
  %s1 = inlined_call_operand.vmem [shape: bf16[128,128], index: 1, kind: input, shape index: {}]
  %s2 = inlined_call_operand.vmem [shape: bf16[3,128,128], index: 2, kind: input, shape index: {}]
  %s3 = inlined_call_operand.vmem [shape: f32[3,1,128], index: 3, kind: input, shape index: {}]
  %s4 = inlined_call_operand.vmem [shape: bf16[3,128,128], index: 4, kind: input, shape index: {}]
  %s5 = inlined_call_operand.vmem [shape: f32[3,1,128], index: 5, kind: input, shape index: {}]
  %s6 = inlined_call_operand.vmem [shape: bf16[8,128], index: 6, kind: input, shape index: {}]
  %s7 = inlined_call_operand.vmem [shape: bf16[128,128], index: 7, kind: input, shape index: {}]
  %s8 = inlined_call_operand.vmem [shape: f32[1,128], index: 8, kind: input, shape index: {}]
  %s9 = inlined_call_operand.vmem [shape: bf16[128,128], index: 9, kind: input, shape index: {}]
  %s10 = inlined_call_operand.vmem [shape: f32[1,128], index: 10, kind: input, shape index: {}]
  %s11 = inlined_call_operand.vmem [shape: f32[8,128], index: 11, kind: output, shape index: {}]
  %s12 = sld [smem:[#allocation0]]
  $region54: #{net_forward.1} parent=0
    _
  %s14 = ssub.s32 1, %s12
  %s15 = scalar_select 0, %s14, %s12
  // Predicated region
  $region2: #{net_forward.1} parent=0 // pred_check
    _
  $region3: #{net_forward.1} parent=0 // pred_check_branch
    %17 = sbr.rel (0) target = $region5
  $region4: #{net_forward.1} parent=0 // pred_region
    _
  $region5: #{net_forward.1} parent=0 // pred_fallthru
    _
  // Predicated region
  $region6: #{net_forward.1} parent=0 // pred_check
    _
  $region7: #{net_forward.1} parent=0 // pred_check_branch
    %19 = sbr.rel (0) target = $region9
  $region8: #{net_forward.1} parent=0 // pred_region
    _
  $region9: #{net_forward.1} parent=0 // pred_fallthru
    _
  // Predicated region
  $region10: #{net_forward.1} parent=0 // pred_check
    _
  $region11: #{net_forward.1} parent=0 // pred_check_branch
    %21 = sbr.rel (0) target = $region13
  $region12: #{net_forward.1} parent=0 // pred_region
    _
  $region13: #{net_forward.1} parent=0 // pred_fallthru
    _
  // Predicated region
  $region14: #{net_forward.1} parent=0 // pred_check
    _
  $region15: #{net_forward.1} parent=0 // pred_check_branch
    %23 = sbr.rel (0) target = $region17
  $region16: #{net_forward.1} parent=0 // pred_region
    _
  $region17: #{net_forward.1} parent=0 // pred_fallthru
    _
  // Predicated region
  $region18: #{net_forward.1} parent=0 // pred_check
    _
  $region19: #{net_forward.1} parent=0 // pred_check_branch
    %25 = sbr.rel (0) target = $region21
  $region20: #{net_forward.1} parent=0 // pred_region
    _
  $region21: #{net_forward.1} parent=0 // pred_fallthru
    _
  // Predicated region
  $region22: #{net_forward.1} parent=0 // pred_check
    _
  $region23: #{net_forward.1} parent=0 // pred_check_branch
    %27 = sbr.rel (0) target = $region25
  $region24: #{net_forward.1} parent=0 // pred_region
    _
  $region25: #{net_forward.1} parent=0 // pred_fallthru
    _
  // Predicated region
  $region26: #{net_forward.1} parent=0 // pred_check
    _
  $region27: #{net_forward.1} parent=0 // pred_check_branch
    %29 = sbr.rel (0) target = $region29
  $region28: #{net_forward.1} parent=0 // pred_region
    _
  $region29: #{net_forward.1} parent=0 // pred_fallthru
    _
  // Predicated region
  $region30: #{net_forward.1} parent=0 // pred_check
    _
  $region31: #{net_forward.1} parent=0 // pred_check_branch
    %31 = sbr.rel (0) target = $region33
  $region32: #{net_forward.1} parent=0 // pred_region
    _
  $region33: #{net_forward.1} parent=0 // pred_fallthru
    _
  // Predicated region
  $region34: #{net_forward.1} parent=0 // pred_check
    _
  $region35: #{net_forward.1} parent=0 // pred_check_branch
    %33 = sbr.rel (0) target = $region37
  $region36: #{net_forward.1} parent=0 // pred_region
    _
  $region37: #{net_forward.1} parent=0 // pred_fallthru
    _
  // Predicated region
  $region38: #{net_forward.1} parent=0 // pred_check
    _
  $region39: #{net_forward.1} parent=0 // pred_check_branch
    %35 = sbr.rel (0) target = $region41
  $region40: #{net_forward.1} parent=0 // pred_region
    _
  $region41: #{net_forward.1} parent=0 // pred_fallthru
    _
  // Predicated region
  $region42: #{net_forward.1} parent=0 // pred_check
    _
  $region43: #{net_forward.1} parent=0 // pred_check_branch
    %37 = sbr.rel (0) target = $region45
  $region44: #{net_forward.1} parent=0 // pred_region
    _
  $region45: #{net_forward.1} parent=0 // pred_fallthru
    _
  %v38 = vld [vmem:[%s0] sm:$0xf]
  %v39 = vld [vmem:[%s0 + $0x4] sm:$0xf]
  %v40 = vld [vmem:[%s0 + $0x8] sm:$0xf]
  %v41 = vld [vmem:[%s0 + $0xc] sm:$0xf]
  %v42 = vld [vmem:[%s0 + $0x10] sm:$0xf]
  %v43 = vld [vmem:[%s0 + $0x14] sm:$0xf]
  %v44 = vld [vmem:[%s0 + $0x18] sm:$0xf]
  %v45 = vld [vmem:[%s0 + $0x1c] sm:$0xf]
  %v46 = vld [vmem:[%s0 + $0x20] sm:$0xf]
  %v47 = vld [vmem:[%s0 + $0x24] sm:$0xf]
  %v48 = vld [vmem:[%s0 + $0x28] sm:$0xf]
  %v49 = vld [vmem:[%s0 + $0x2c] sm:$0xf]
  %v50 = vld [vmem:[%s0 + $0x30] sm:$0xf]
  %v51 = vld [vmem:[%s0 + $0x34] sm:$0xf]
  %v52 = vld [vmem:[%s0 + $0x38] sm:$0xf]
  %v53 = vld [vmem:[%s0 + $0x3c] sm:$0xf]
  %v54 = vld [vmem:[%s1] sm:$0xf]
  %v55 = vld [vmem:[%s1 + $0x4] sm:$0xf]
  %v56 = vld [vmem:[%s1 + $0x8] sm:$0xf]
  %v57 = vld [vmem:[%s1 + $0xc] sm:$0xf]
  %v58 = vld [vmem:[%s1 + $0x10] sm:$0xf]
  %v59 = vld [vmem:[%s1 + $0x14] sm:$0xf]
  %v60 = vld [vmem:[%s1 + $0x18] sm:$0xf]
  %v61 = vld [vmem:[%s1 + $0x1c] sm:$0xf]
  %v62 = vld [vmem:[%s1 + $0x20] sm:$0xf]
  %v63 = vld [vmem:[%s1 + $0x24] sm:$0xf]
  %v64 = vld [vmem:[%s1 + $0x28] sm:$0xf]
  %v65 = vld [vmem:[%s1 + $0x2c] sm:$0xf]
  %v66 = vld [vmem:[%s1 + $0x30] sm:$0xf]
  %v67 = vld [vmem:[%s1 + $0x34] sm:$0xf]
  %v68 = vld [vmem:[%s1 + $0x38] sm:$0xf]
  %v69 = vld [vmem:[%s1 + $0x3c] sm:$0xf]
  %v86 = vunpack.c.l.b16 %v38
  %v87 = vunpack.c.l.b16 %v39
  %v88 = vunpack.c.l.b16 %v40
  %v89 = vunpack.c.l.b16 %v41
  %v90 = vunpack.c.l.b16 %v42
  %v91 = vunpack.c.l.b16 %v43
  %v92 = vunpack.c.l.b16 %v44
  %v93 = vunpack.c.l.b16 %v45
  %v94 = vunpack.c.l.b16 %v46
  %v95 = vunpack.c.l.b16 %v47
  %v96 = vunpack.c.l.b16 %v48
  %v97 = vunpack.c.l.b16 %v49
  %v98 = vunpack.c.l.b16 %v50
  %v99 = vunpack.c.l.b16 %v51
  %v100 = vunpack.c.l.b16 %v52
  %v101 = vunpack.c.l.b16 %v53
  %v102 = vpack.c.b16 %v87, %v86
  %v103 = vpack.c.b16 %v89, %v88
  %v104 = vpack.c.b16 %v91, %v90
  %v105 = vpack.c.b16 %v93, %v92
  %v106 = vpack.c.b16 %v95, %v94
  %v107 = vpack.c.b16 %v97, %v96
  %v108 = vpack.c.b16 %v99, %v98
  %v109 = vpack.c.b16 %v101, %v100
  %v134 = vunpack.c.l.b16 %v54
  %v135 = vunpack.c.l.b16 %v55
  %v136 = vunpack.c.l.b16 %v56
  %v137 = vunpack.c.l.b16 %v57
  %v138 = vunpack.c.l.b16 %v58
  %v139 = vunpack.c.l.b16 %v59
  %v140 = vunpack.c.l.b16 %v60
  %v141 = vunpack.c.l.b16 %v61
  %v142 = vunpack.c.l.b16 %v62
  %v143 = vunpack.c.l.b16 %v63
  %v144 = vunpack.c.l.b16 %v64
  %v145 = vunpack.c.l.b16 %v65
  %v146 = vunpack.c.l.b16 %v66
  %v147 = vunpack.c.l.b16 %v67
  %v148 = vunpack.c.l.b16 %v68
  %v149 = vunpack.c.l.b16 %v69
  %v150 = vpack.c.b16 %v135, %v134
  %v151 = vpack.c.b16 %v137, %v136
  %v152 = vpack.c.b16 %v139, %v138
  %v153 = vpack.c.b16 %v141, %v140
  %v154 = vpack.c.b16 %v143, %v142
  %v155 = vpack.c.b16 %v145, %v144
  %v156 = vpack.c.b16 %v147, %v146
  %v157 = vpack.c.b16 %v149, %v148
  %166 = vmatpush.bf16.msra.mxu0 %v157
  %167 = vmatpush.bf16.msra.mxu0 %v156
  %168 = vmatpush.bf16.msra.mxu0 %v155
  %169 = vmatpush.bf16.msra.mxu0 %v154
  %170 = vmatpush.bf16.msra.mxu0 %v153
  %171 = vmatpush.bf16.msra.mxu0 %v152
  %172 = vmatpush.bf16.msra.mxu0 %v151
  %173 = vmatpush.bf16.msra.mxu0 %v150
  %174 = vmatmul.bf16.gmra.mxu0 %v102
  %v175 = vpop.f32.mrf.mxu0
  %v176 = vadd.f32 0.0, %v175
  %v177 = vpop.f32.mrf.mxu0
  %v178 = vadd.f32 0.0, %v177
  %179 = vmatmul.bf16.gmra.mxu0 %v103
  %v180 = vpop.f32.mrf.mxu0
  %v181 = vadd.f32 0.0, %v180
  %v182 = vpop.f32.mrf.mxu0
  %v183 = vadd.f32 0.0, %v182
  %184 = vmatmul.bf16.gmra.mxu0 %v104
  %v185 = vpop.f32.mrf.mxu0
  %v186 = vadd.f32 0.0, %v185
  %v187 = vpop.f32.mrf.mxu0
  %v188 = vadd.f32 0.0, %v187
  %189 = vmatmul.bf16.gmra.mxu0 %v105
  %v190 = vpop.f32.mrf.mxu0
  %v191 = vadd.f32 0.0, %v190
  %v192 = vpop.f32.mrf.mxu0
  %v193 = vadd.f32 0.0, %v192
  %194 = vmatmul.bf16.gmra.mxu0 %v106
  %v195 = vpop.f32.mrf.mxu0
  %v196 = vadd.f32 0.0, %v195
  %v197 = vpop.f32.mrf.mxu0
  %v198 = vadd.f32 0.0, %v197
  %199 = vmatmul.bf16.gmra.mxu0 %v107
  %v200 = vpop.f32.mrf.mxu0
  %v201 = vadd.f32 0.0, %v200
  %v202 = vpop.f32.mrf.mxu0
  %v203 = vadd.f32 0.0, %v202
  %204 = vmatmul.bf16.gmra.mxu0 %v108
  %v205 = vpop.f32.mrf.mxu0
  %v206 = vadd.f32 0.0, %v205
  %v207 = vpop.f32.mrf.mxu0
  %v208 = vadd.f32 0.0, %v207
  %209 = vmatmul.bf16.gmra.mxu0 %v109
  %v210 = vpop.f32.mrf.mxu0
  %v211 = vadd.f32 0.0, %v210
  %v212 = vpop.f32.mrf.mxu0
  %v213 = vadd.f32 0.0, %v212
  %214 = vdwg.mxu0
  %v215 = vpack.c.bf16 %v178, %v176
  %v216 = vpack.c.bf16 %v183, %v181
  %v217 = vpack.c.bf16 %v188, %v186
  %v218 = vpack.c.bf16 %v193, %v191
  %v219 = vpack.c.bf16 %v198, %v196
  %v220 = vpack.c.bf16 %v203, %v201
  %v221 = vpack.c.bf16 %v208, %v206
  %v222 = vpack.c.bf16 %v213, %v211
  %v223 = vld [vmem:[%s2] sm:$0xf]
  %v224 = vld [vmem:[%s2 + $0x4] sm:$0xf]
  %v225 = vld [vmem:[%s2 + $0x8] sm:$0xf]
  %v226 = vld [vmem:[%s2 + $0xc] sm:$0xf]
  %v227 = vld [vmem:[%s2 + $0x10] sm:$0xf]
  %v228 = vld [vmem:[%s2 + $0x14] sm:$0xf]
  %v229 = vld [vmem:[%s2 + $0x18] sm:$0xf]
  %v230 = vld [vmem:[%s2 + $0x1c] sm:$0xf]
  %v231 = vld [vmem:[%s2 + $0x20] sm:$0xf]
  %v232 = vld [vmem:[%s2 + $0x24] sm:$0xf]
  %v233 = vld [vmem:[%s2 + $0x28] sm:$0xf]
  %v234 = vld [vmem:[%s2 + $0x2c] sm:$0xf]
  %v235 = vld [vmem:[%s2 + $0x30] sm:$0xf]
  %v236 = vld [vmem:[%s2 + $0x34] sm:$0xf]
  %v237 = vld [vmem:[%s2 + $0x38] sm:$0xf]
  %v238 = vld [vmem:[%s2 + $0x3c] sm:$0xf]
  %v239 = vld [vmem:[%s3] sm:$0x1]
  %v241 = vperm.slane %v239, 0
  %v259 = vunpack.c.l.b16 %v223
  %v260 = vunpack.c.l.b16 %v224
  %v261 = vunpack.c.l.b16 %v225
  %v262 = vunpack.c.l.b16 %v226
  %v263 = vunpack.c.l.b16 %v227
  %v264 = vunpack.c.l.b16 %v228
  %v265 = vunpack.c.l.b16 %v229
  %v266 = vunpack.c.l.b16 %v230
  %v267 = vunpack.c.l.b16 %v231
  %v268 = vunpack.c.l.b16 %v232
  %v269 = vunpack.c.l.b16 %v233
  %v270 = vunpack.c.l.b16 %v234
  %v271 = vunpack.c.l.b16 %v235
  %v272 = vunpack.c.l.b16 %v236
  %v273 = vunpack.c.l.b16 %v237
  %v274 = vunpack.c.l.b16 %v238
  %v275 = vpack.c.b16 %v260, %v259
  %v276 = vpack.c.b16 %v262, %v261
  %v277 = vpack.c.b16 %v264, %v263
  %v278 = vpack.c.b16 %v266, %v265
  %v279 = vpack.c.b16 %v268, %v267
  %v280 = vpack.c.b16 %v270, %v269
  %v281 = vpack.c.b16 %v272, %v271
  %v282 = vpack.c.b16 %v274, %v273
  %291 = vmatpush.bf16.msra.mxu0 %v282
  %292 = vmatpush.bf16.msra.mxu0 %v281
  %293 = vmatpush.bf16.msra.mxu0 %v280
  %294 = vmatpush.bf16.msra.mxu0 %v279
  %295 = vmatpush.bf16.msra.mxu0 %v278
  %296 = vmatpush.bf16.msra.mxu0 %v277
  %297 = vmatpush.bf16.msra.mxu0 %v276
  %298 = vmatpush.bf16.msra.mxu0 %v275
  %299 = vmatmul.bf16.gmra.mxu0 %v215
  %v300 = vpop.f32.mrf.mxu0
  %v301 = vadd.f32 %v241, %v300
  %v302 = vpop.f32.mrf.mxu0
  %v303 = vadd.f32 %v241, %v302
  %304 = vmatmul.bf16.gmra.mxu0 %v216
  %v305 = vpop.f32.mrf.mxu0
  %v306 = vadd.f32 %v241, %v305
  %v307 = vpop.f32.mrf.mxu0
  %v308 = vadd.f32 %v241, %v307
  %309 = vmatmul.bf16.gmra.mxu0 %v217
  %v310 = vpop.f32.mrf.mxu0
  %v311 = vadd.f32 %v241, %v310
  %v312 = vpop.f32.mrf.mxu0
  %v313 = vadd.f32 %v241, %v312
  %314 = vmatmul.bf16.gmra.mxu0 %v218
  %v315 = vpop.f32.mrf.mxu0
  %v316 = vadd.f32 %v241, %v315
  %v317 = vpop.f32.mrf.mxu0
  %v318 = vadd.f32 %v241, %v317
  %319 = vmatmul.bf16.gmra.mxu0 %v219
  %v320 = vpop.f32.mrf.mxu0
  %v321 = vadd.f32 %v241, %v320
  %v322 = vpop.f32.mrf.mxu0
  %v323 = vadd.f32 %v241, %v322
  %324 = vmatmul.bf16.gmra.mxu0 %v220
  %v325 = vpop.f32.mrf.mxu0
  %v326 = vadd.f32 %v241, %v325
  %v327 = vpop.f32.mrf.mxu0
  %v328 = vadd.f32 %v241, %v327
  %329 = vmatmul.bf16.gmra.mxu0 %v221
  %v330 = vpop.f32.mrf.mxu0
  %v331 = vadd.f32 %v241, %v330
  %v332 = vpop.f32.mrf.mxu0
  %v333 = vadd.f32 %v241, %v332
  %334 = vmatmul.bf16.gmra.mxu0 %v222
  %v335 = vpop.f32.mrf.mxu0
  %v336 = vadd.f32 %v241, %v335
  %v337 = vpop.f32.mrf.mxu0
  %v338 = vadd.f32 %v241, %v337
  %339 = vdwg.mxu0
  %v340 = vmax.f32 %v301, 0.0
  %v341 = vmax.f32 %v303, 0.0
  %v342 = vmax.f32 %v306, 0.0
  %v343 = vmax.f32 %v308, 0.0
  %v344 = vmax.f32 %v311, 0.0
  %v345 = vmax.f32 %v313, 0.0
  %v346 = vmax.f32 %v316, 0.0
  %v347 = vmax.f32 %v318, 0.0
  %v348 = vmax.f32 %v321, 0.0
  %v349 = vmax.f32 %v323, 0.0
  %v350 = vmax.f32 %v326, 0.0
  %v351 = vmax.f32 %v328, 0.0
  %v352 = vmax.f32 %v331, 0.0
  %v353 = vmax.f32 %v333, 0.0
  %v354 = vmax.f32 %v336, 0.0
  %v355 = vmax.f32 %v338, 0.0
  %v356 = vpack.c.bf16 %v341, %v340
  %v357 = vpack.c.bf16 %v343, %v342
  %v358 = vpack.c.bf16 %v345, %v344
  %v359 = vpack.c.bf16 %v347, %v346
  %v360 = vpack.c.bf16 %v349, %v348
  %v361 = vpack.c.bf16 %v351, %v350
  %v362 = vpack.c.bf16 %v353, %v352
  %v363 = vpack.c.bf16 %v355, %v354
  %v364 = vld [vmem:[%s4] sm:$0xf]
  %v365 = vld [vmem:[%s4 + $0x4] sm:$0xf]
  %v366 = vld [vmem:[%s4 + $0x8] sm:$0xf]
  %v367 = vld [vmem:[%s4 + $0xc] sm:$0xf]
  %v368 = vld [vmem:[%s4 + $0x10] sm:$0xf]
  %v369 = vld [vmem:[%s4 + $0x14] sm:$0xf]
  %v370 = vld [vmem:[%s4 + $0x18] sm:$0xf]
  %v371 = vld [vmem:[%s4 + $0x1c] sm:$0xf]
  %v372 = vld [vmem:[%s4 + $0x20] sm:$0xf]
  %v373 = vld [vmem:[%s4 + $0x24] sm:$0xf]
  %v374 = vld [vmem:[%s4 + $0x28] sm:$0xf]
  %v375 = vld [vmem:[%s4 + $0x2c] sm:$0xf]
  %v376 = vld [vmem:[%s4 + $0x30] sm:$0xf]
  %v377 = vld [vmem:[%s4 + $0x34] sm:$0xf]
  %v378 = vld [vmem:[%s4 + $0x38] sm:$0xf]
  %v379 = vld [vmem:[%s4 + $0x3c] sm:$0xf]
  %v380 = vld [vmem:[%s5] sm:$0x1]
  %v382 = vperm.slane %v380, 0
  %v400 = vunpack.c.l.b16 %v364
  %v401 = vunpack.c.l.b16 %v365
  %v402 = vunpack.c.l.b16 %v366
  %v403 = vunpack.c.l.b16 %v367
  %v404 = vunpack.c.l.b16 %v368
  %v405 = vunpack.c.l.b16 %v369
  %v406 = vunpack.c.l.b16 %v370
  %v407 = vunpack.c.l.b16 %v371
  %v408 = vunpack.c.l.b16 %v372
  %v409 = vunpack.c.l.b16 %v373
  %v410 = vunpack.c.l.b16 %v374
  %v411 = vunpack.c.l.b16 %v375
  %v412 = vunpack.c.l.b16 %v376
  %v413 = vunpack.c.l.b16 %v377
  %v414 = vunpack.c.l.b16 %v378
  %v415 = vunpack.c.l.b16 %v379
  %v416 = vpack.c.b16 %v401, %v400
  %v417 = vpack.c.b16 %v403, %v402
  %v418 = vpack.c.b16 %v405, %v404
  %v419 = vpack.c.b16 %v407, %v406
  %v420 = vpack.c.b16 %v409, %v408
  %v421 = vpack.c.b16 %v411, %v410
  %v422 = vpack.c.b16 %v413, %v412
  %v423 = vpack.c.b16 %v415, %v414
  %432 = vmatpush.bf16.msra.mxu0 %v423
  %433 = vmatpush.bf16.msra.mxu0 %v422
  %434 = vmatpush.bf16.msra.mxu0 %v421
  %435 = vmatpush.bf16.msra.mxu0 %v420
  %436 = vmatpush.bf16.msra.mxu0 %v419
  %437 = vmatpush.bf16.msra.mxu0 %v418
  %438 = vmatpush.bf16.msra.mxu0 %v417
  %439 = vmatpush.bf16.msra.mxu0 %v416
  %440 = vmatmul.bf16.gmra.mxu0 %v356
  %v441 = vpop.f32.mrf.mxu0
  %v442 = vadd.f32 %v382, %v441
  %v443 = vpop.f32.mrf.mxu0
  %v444 = vadd.f32 %v382, %v443
  %445 = vmatmul.bf16.gmra.mxu0 %v357
  %v446 = vpop.f32.mrf.mxu0
  %v447 = vadd.f32 %v382, %v446
  %v448 = vpop.f32.mrf.mxu0
  %v449 = vadd.f32 %v382, %v448
  %450 = vmatmul.bf16.gmra.mxu0 %v358
  %v451 = vpop.f32.mrf.mxu0
  %v452 = vadd.f32 %v382, %v451
  %v453 = vpop.f32.mrf.mxu0
  %v454 = vadd.f32 %v382, %v453
  %455 = vmatmul.bf16.gmra.mxu0 %v359
  %v456 = vpop.f32.mrf.mxu0
  %v457 = vadd.f32 %v382, %v456
  %v458 = vpop.f32.mrf.mxu0
  %v459 = vadd.f32 %v382, %v458
  %460 = vmatmul.bf16.gmra.mxu0 %v360
  %v461 = vpop.f32.mrf.mxu0
  %v462 = vadd.f32 %v382, %v461
  %v463 = vpop.f32.mrf.mxu0
  %v464 = vadd.f32 %v382, %v463
  %465 = vmatmul.bf16.gmra.mxu0 %v361
  %v466 = vpop.f32.mrf.mxu0
  %v467 = vadd.f32 %v382, %v466
  %v468 = vpop.f32.mrf.mxu0
  %v469 = vadd.f32 %v382, %v468
  %470 = vmatmul.bf16.gmra.mxu0 %v362
  %v471 = vpop.f32.mrf.mxu0
  %v472 = vadd.f32 %v382, %v471
  %v473 = vpop.f32.mrf.mxu0
  %v474 = vadd.f32 %v382, %v473
  %475 = vmatmul.bf16.gmra.mxu0 %v363
  %v476 = vpop.f32.mrf.mxu0
  %v477 = vadd.f32 %v382, %v476
  %v478 = vpop.f32.mrf.mxu0
  %v479 = vadd.f32 %v382, %v478
  %480 = vdwg.mxu0
  %v481 = vmax.f32 %v442, 0.0
  %v482 = vmax.f32 %v444, 0.0
  %v483 = vmax.f32 %v447, 0.0
  %v484 = vmax.f32 %v449, 0.0
  %v485 = vmax.f32 %v452, 0.0
  %v486 = vmax.f32 %v454, 0.0
  %v487 = vmax.f32 %v457, 0.0
  %v488 = vmax.f32 %v459, 0.0
  %v489 = vmax.f32 %v462, 0.0
  %v490 = vmax.f32 %v464, 0.0
  %v491 = vmax.f32 %v467, 0.0
  %v492 = vmax.f32 %v469, 0.0
  %v493 = vmax.f32 %v472, 0.0
  %v494 = vmax.f32 %v474, 0.0
  %v495 = vmax.f32 %v477, 0.0
  %v496 = vmax.f32 %v479, 0.0
  %v497 = vpack.c.bf16 %v482, %v481
  %v498 = vpack.c.bf16 %v484, %v483
  %v499 = vpack.c.bf16 %v486, %v485
  %v500 = vpack.c.bf16 %v488, %v487
  %v501 = vpack.c.bf16 %v490, %v489
  %v502 = vpack.c.bf16 %v492, %v491
  %v503 = vpack.c.bf16 %v494, %v493
  %v504 = vpack.c.bf16 %v496, %v495
  %505 = vmatpush.bf16.msra.mxu0 %v504
  %506 = vmatpush.bf16.msra.mxu0 %v503
  %507 = vmatpush.bf16.msra.mxu0 %v502
  %508 = vmatpush.bf16.msra.mxu0 %v501
  %509 = vmatpush.bf16.msra.mxu0 %v500
  %510 = vmatpush.bf16.msra.mxu0 %v499
  %511 = vmatpush.bf16.msra.mxu0 %v498
  %512 = vmatpush.bf16.msra.mxu0 %v497
  %513 = vmatmul.bf16.gmra.mxu0 %v102
  %v514 = vpop.f32.mrf.mxu0
  %v515 = vadd.f32 0.0, %v514
  %v516 = vpop.f32.mrf.mxu0
  %v517 = vadd.f32 0.0, %v516
  %518 = vmatmul.bf16.gmra.mxu0 %v103
  %v519 = vpop.f32.mrf.mxu0
  %v520 = vadd.f32 0.0, %v519
  %v521 = vpop.f32.mrf.mxu0
  %v522 = vadd.f32 0.0, %v521
  %523 = vmatmul.bf16.gmra.mxu0 %v104
  %v524 = vpop.f32.mrf.mxu0
  %v525 = vadd.f32 0.0, %v524
  %v526 = vpop.f32.mrf.mxu0
  %v527 = vadd.f32 0.0, %v526
  %528 = vmatmul.bf16.gmra.mxu0 %v105
  %v529 = vpop.f32.mrf.mxu0
  %v530 = vadd.f32 0.0, %v529
  %v531 = vpop.f32.mrf.mxu0
  %v532 = vadd.f32 0.0, %v531
  %533 = vmatmul.bf16.gmra.mxu0 %v106
  %v534 = vpop.f32.mrf.mxu0
  %v535 = vadd.f32 0.0, %v534
  %v536 = vpop.f32.mrf.mxu0
  %v537 = vadd.f32 0.0, %v536
  %538 = vmatmul.bf16.gmra.mxu0 %v107
  %v539 = vpop.f32.mrf.mxu0
  %v540 = vadd.f32 0.0, %v539
  %v541 = vpop.f32.mrf.mxu0
  %v542 = vadd.f32 0.0, %v541
  %543 = vmatmul.bf16.gmra.mxu0 %v108
  %v544 = vpop.f32.mrf.mxu0
  %v545 = vadd.f32 0.0, %v544
  %v546 = vpop.f32.mrf.mxu0
  %v547 = vadd.f32 0.0, %v546
  %548 = vmatmul.bf16.gmra.mxu0 %v109
  %v549 = vpop.f32.mrf.mxu0
  %v550 = vadd.f32 0.0, %v549
  %v551 = vpop.f32.mrf.mxu0
  %v552 = vadd.f32 0.0, %v551
  %553 = vdwg.mxu0
  %v554 = vpack.c.bf16 %v517, %v515
  %v555 = vpack.c.bf16 %v522, %v520
  %v556 = vpack.c.bf16 %v527, %v525
  %v557 = vpack.c.bf16 %v532, %v530
  %v558 = vpack.c.bf16 %v537, %v535
  %v559 = vpack.c.bf16 %v542, %v540
  %v560 = vpack.c.bf16 %v547, %v545
  %v561 = vpack.c.bf16 %v552, %v550
  %s562 = scalar_lea.vmem %s2, 64
  %v563 = vld [vmem:[%s562] sm:$0xf]
  %v564 = vld [vmem:[%s562 + $0x4] sm:$0xf]
  %v565 = vld [vmem:[%s562 + $0x8] sm:$0xf]
  %v566 = vld [vmem:[%s562 + $0xc] sm:$0xf]
  %v567 = vld [vmem:[%s562 + $0x10] sm:$0xf]
  %v568 = vld [vmem:[%s562 + $0x14] sm:$0xf]
  %v569 = vld [vmem:[%s562 + $0x18] sm:$0xf]
  %v570 = vld [vmem:[%s562 + $0x1c] sm:$0xf]
  %v571 = vld [vmem:[%s562 + $0x20] sm:$0xf]
  %v572 = vld [vmem:[%s562 + $0x24] sm:$0xf]
  %v573 = vld [vmem:[%s562 + $0x28] sm:$0xf]
  %v574 = vld [vmem:[%s562 + $0x2c] sm:$0xf]
  %v575 = vld [vmem:[%s562 + $0x30] sm:$0xf]
  %v576 = vld [vmem:[%s562 + $0x34] sm:$0xf]
  %v577 = vld [vmem:[%s562 + $0x38] sm:$0xf]
  %v578 = vld [vmem:[%s562 + $0x3c] sm:$0xf]
  %s579 = scalar_lea.vmem %s3, 1
  %v580 = vld [vmem:[%s579] sm:$0x1]
  %v582 = vperm.slane %v580, 0
  %v600 = vunpack.c.l.b16 %v563
  %v601 = vunpack.c.l.b16 %v564
  %v602 = vunpack.c.l.b16 %v565
  %v603 = vunpack.c.l.b16 %v566
  %v604 = vunpack.c.l.b16 %v567
  %v605 = vunpack.c.l.b16 %v568
  %v606 = vunpack.c.l.b16 %v569
  %v607 = vunpack.c.l.b16 %v570
  %v608 = vunpack.c.l.b16 %v571
  %v609 = vunpack.c.l.b16 %v572
  %v610 = vunpack.c.l.b16 %v573
  %v611 = vunpack.c.l.b16 %v574
  %v612 = vunpack.c.l.b16 %v575
  %v613 = vunpack.c.l.b16 %v576
  %v614 = vunpack.c.l.b16 %v577
  %v615 = vunpack.c.l.b16 %v578
  %v616 = vpack.c.b16 %v601, %v600
  %v617 = vpack.c.b16 %v603, %v602
  %v618 = vpack.c.b16 %v605, %v604
  %v619 = vpack.c.b16 %v607, %v606
  %v620 = vpack.c.b16 %v609, %v608
  %v621 = vpack.c.b16 %v611, %v610
  %v622 = vpack.c.b16 %v613, %v612
  %v623 = vpack.c.b16 %v615, %v614
  %632 = vmatpush.bf16.msra.mxu0 %v623
  %633 = vmatpush.bf16.msra.mxu0 %v622
  %634 = vmatpush.bf16.msra.mxu0 %v621
  %635 = vmatpush.bf16.msra.mxu0 %v620
  %636 = vmatpush.bf16.msra.mxu0 %v619
  %637 = vmatpush.bf16.msra.mxu0 %v618
  %638 = vmatpush.bf16.msra.mxu0 %v617
  %639 = vmatpush.bf16.msra.mxu0 %v616
  %640 = vmatmul.bf16.gmra.mxu0 %v554
  %v641 = vpop.f32.mrf.mxu0
  %v642 = vadd.f32 %v582, %v641
  %v643 = vpop.f32.mrf.mxu0
  %v644 = vadd.f32 %v582, %v643
  %645 = vmatmul.bf16.gmra.mxu0 %v555
  %v646 = vpop.f32.mrf.mxu0
  %v647 = vadd.f32 %v582, %v646
  %v648 = vpop.f32.mrf.mxu0
  %v649 = vadd.f32 %v582, %v648
  %650 = vmatmul.bf16.gmra.mxu0 %v556
  %v651 = vpop.f32.mrf.mxu0
  %v652 = vadd.f32 %v582, %v651
  %v653 = vpop.f32.mrf.mxu0
  %v654 = vadd.f32 %v582, %v653
  %655 = vmatmul.bf16.gmra.mxu0 %v557
  %v656 = vpop.f32.mrf.mxu0
  %v657 = vadd.f32 %v582, %v656
  %v658 = vpop.f32.mrf.mxu0
  %v659 = vadd.f32 %v582, %v658
  %660 = vmatmul.bf16.gmra.mxu0 %v558
  %v661 = vpop.f32.mrf.mxu0
  %v662 = vadd.f32 %v582, %v661
  %v663 = vpop.f32.mrf.mxu0
  %v664 = vadd.f32 %v582, %v663
  %665 = vmatmul.bf16.gmra.mxu0 %v559
  %v666 = vpop.f32.mrf.mxu0
  %v667 = vadd.f32 %v582, %v666
  %v668 = vpop.f32.mrf.mxu0
  %v669 = vadd.f32 %v582, %v668
  %670 = vmatmul.bf16.gmra.mxu0 %v560
  %v671 = vpop.f32.mrf.mxu0
  %v672 = vadd.f32 %v582, %v671
  %v673 = vpop.f32.mrf.mxu0
  %v674 = vadd.f32 %v582, %v673
  %675 = vmatmul.bf16.gmra.mxu0 %v561
  %v676 = vpop.f32.mrf.mxu0
  %v677 = vadd.f32 %v582, %v676
  %v678 = vpop.f32.mrf.mxu0
  %v679 = vadd.f32 %v582, %v678
  %680 = vdwg.mxu0
  %v681 = vmax.f32 %v642, 0.0
  %v682 = vmax.f32 %v644, 0.0
  %v683 = vmax.f32 %v647, 0.0
  %v684 = vmax.f32 %v649, 0.0
  %v685 = vmax.f32 %v652, 0.0
  %v686 = vmax.f32 %v654, 0.0
  %v687 = vmax.f32 %v657, 0.0
  %v688 = vmax.f32 %v659, 0.0
  %v689 = vmax.f32 %v662, 0.0
  %v690 = vmax.f32 %v664, 0.0
  %v691 = vmax.f32 %v667, 0.0
  %v692 = vmax.f32 %v669, 0.0
  %v693 = vmax.f32 %v672, 0.0
  %v694 = vmax.f32 %v674, 0.0
  %v695 = vmax.f32 %v677, 0.0
  %v696 = vmax.f32 %v679, 0.0
  %v697 = vpack.c.bf16 %v682, %v681
  %v698 = vpack.c.bf16 %v684, %v683
  %v699 = vpack.c.bf16 %v686, %v685
  %v700 = vpack.c.bf16 %v688, %v687
  %v701 = vpack.c.bf16 %v690, %v689
  %v702 = vpack.c.bf16 %v692, %v691
  %v703 = vpack.c.bf16 %v694, %v693
  %v704 = vpack.c.bf16 %v696, %v695
  %s705 = scalar_lea.vmem %s4, 64
  %v706 = vld [vmem:[%s705] sm:$0xf]
  %v707 = vld [vmem:[%s705 + $0x4] sm:$0xf]
  %v708 = vld [vmem:[%s705 + $0x8] sm:$0xf]
  %v709 = vld [vmem:[%s705 + $0xc] sm:$0xf]
  %v710 = vld [vmem:[%s705 + $0x10] sm:$0xf]
  %v711 = vld [vmem:[%s705 + $0x14] sm:$0xf]
  %v712 = vld [vmem:[%s705 + $0x18] sm:$0xf]
  %v713 = vld [vmem:[%s705 + $0x1c] sm:$0xf]
  %v714 = vld [vmem:[%s705 + $0x20] sm:$0xf]
  %v715 = vld [vmem:[%s705 + $0x24] sm:$0xf]
  %v716 = vld [vmem:[%s705 + $0x28] sm:$0xf]
  %v717 = vld [vmem:[%s705 + $0x2c] sm:$0xf]
  %v718 = vld [vmem:[%s705 + $0x30] sm:$0xf]
  %v719 = vld [vmem:[%s705 + $0x34] sm:$0xf]
  %v720 = vld [vmem:[%s705 + $0x38] sm:$0xf]
  %v721 = vld [vmem:[%s705 + $0x3c] sm:$0xf]
  %s722 = scalar_lea.vmem %s5, 1
  %v723 = vld [vmem:[%s722] sm:$0x1]
  %v725 = vperm.slane %v723, 0
  %v743 = vunpack.c.l.b16 %v706
  %v744 = vunpack.c.l.b16 %v707
  %v745 = vunpack.c.l.b16 %v708
  %v746 = vunpack.c.l.b16 %v709
  %v747 = vunpack.c.l.b16 %v710
  %v748 = vunpack.c.l.b16 %v711
  %v749 = vunpack.c.l.b16 %v712
  %v750 = vunpack.c.l.b16 %v713
  %v751 = vunpack.c.l.b16 %v714
  %v752 = vunpack.c.l.b16 %v715
  %v753 = vunpack.c.l.b16 %v716
  %v754 = vunpack.c.l.b16 %v717
  %v755 = vunpack.c.l.b16 %v718
  %v756 = vunpack.c.l.b16 %v719
  %v757 = vunpack.c.l.b16 %v720
  %v758 = vunpack.c.l.b16 %v721
  %v759 = vpack.c.b16 %v744, %v743
  %v760 = vpack.c.b16 %v746, %v745
  %v761 = vpack.c.b16 %v748, %v747
  %v762 = vpack.c.b16 %v750, %v749
  %v763 = vpack.c.b16 %v752, %v751
  %v764 = vpack.c.b16 %v754, %v753
  %v765 = vpack.c.b16 %v756, %v755
  %v766 = vpack.c.b16 %v758, %v757
  %775 = vmatpush.bf16.msra.mxu0 %v766
  %776 = vmatpush.bf16.msra.mxu0 %v765
  %777 = vmatpush.bf16.msra.mxu0 %v764
  %778 = vmatpush.bf16.msra.mxu0 %v763
  %779 = vmatpush.bf16.msra.mxu0 %v762
  %780 = vmatpush.bf16.msra.mxu0 %v761
  %781 = vmatpush.bf16.msra.mxu0 %v760
  %782 = vmatpush.bf16.msra.mxu0 %v759
  %783 = vmatmul.bf16.gmra.mxu0 %v697
  %v784 = vpop.f32.mrf.mxu0
  %v785 = vadd.f32 %v725, %v784
  %v786 = vpop.f32.mrf.mxu0
  %v787 = vadd.f32 %v725, %v786
  %788 = vmatmul.bf16.gmra.mxu0 %v698
  %v789 = vpop.f32.mrf.mxu0
  %v790 = vadd.f32 %v725, %v789
  %v791 = vpop.f32.mrf.mxu0
  %v792 = vadd.f32 %v725, %v791
  %793 = vmatmul.bf16.gmra.mxu0 %v699
  %v794 = vpop.f32.mrf.mxu0
  %v795 = vadd.f32 %v725, %v794
  %v796 = vpop.f32.mrf.mxu0
  %v797 = vadd.f32 %v725, %v796
  %798 = vmatmul.bf16.gmra.mxu0 %v700
  %v799 = vpop.f32.mrf.mxu0
  %v800 = vadd.f32 %v725, %v799
  %v801 = vpop.f32.mrf.mxu0
  %v802 = vadd.f32 %v725, %v801
  %803 = vmatmul.bf16.gmra.mxu0 %v701
  %v804 = vpop.f32.mrf.mxu0
  %v805 = vadd.f32 %v725, %v804
  %v806 = vpop.f32.mrf.mxu0
  %v807 = vadd.f32 %v725, %v806
  %808 = vmatmul.bf16.gmra.mxu0 %v702
  %v809 = vpop.f32.mrf.mxu0
  %v810 = vadd.f32 %v725, %v809
  %v811 = vpop.f32.mrf.mxu0
  %v812 = vadd.f32 %v725, %v811
  %813 = vmatmul.bf16.gmra.mxu0 %v703
  %v814 = vpop.f32.mrf.mxu0
  %v815 = vadd.f32 %v725, %v814
  %v816 = vpop.f32.mrf.mxu0
  %v817 = vadd.f32 %v725, %v816
  %818 = vmatmul.bf16.gmra.mxu0 %v704
  %v819 = vpop.f32.mrf.mxu0
  %v820 = vadd.f32 %v725, %v819
  %v821 = vpop.f32.mrf.mxu0
  %v822 = vadd.f32 %v725, %v821
  %823 = vdwg.mxu0
  %v824 = vmax.f32 %v785, 0.0
  %v825 = vmax.f32 %v787, 0.0
  %v826 = vmax.f32 %v790, 0.0
  %v827 = vmax.f32 %v792, 0.0
  %v828 = vmax.f32 %v795, 0.0
  %v829 = vmax.f32 %v797, 0.0
  %v830 = vmax.f32 %v800, 0.0
  %v831 = vmax.f32 %v802, 0.0
  %v832 = vmax.f32 %v805, 0.0
  %v833 = vmax.f32 %v807, 0.0
  %v834 = vmax.f32 %v810, 0.0
  %v835 = vmax.f32 %v812, 0.0
  %v836 = vmax.f32 %v815, 0.0
  %v837 = vmax.f32 %v817, 0.0
  %v838 = vmax.f32 %v820, 0.0
  %v839 = vmax.f32 %v822, 0.0
  %v840 = vpack.c.bf16 %v825, %v824
  %v841 = vpack.c.bf16 %v827, %v826
  %v842 = vpack.c.bf16 %v829, %v828
  %v843 = vpack.c.bf16 %v831, %v830
  %v844 = vpack.c.bf16 %v833, %v832
  %v845 = vpack.c.bf16 %v835, %v834
  %v846 = vpack.c.bf16 %v837, %v836
  %v847 = vpack.c.bf16 %v839, %v838
  %848 = vmatpush.bf16.msra.mxu0 %v847
  %849 = vmatpush.bf16.msra.mxu0 %v846
  %850 = vmatpush.bf16.msra.mxu0 %v845
  %851 = vmatpush.bf16.msra.mxu0 %v844
  %852 = vmatpush.bf16.msra.mxu0 %v843
  %853 = vmatpush.bf16.msra.mxu0 %v842
  %854 = vmatpush.bf16.msra.mxu0 %v841
  %855 = vmatpush.bf16.msra.mxu0 %v840
  %856 = vmatmul.bf16.gmra.mxu0 %v102
  %v857 = vpop.f32.mrf.mxu0
  %v858 = vadd.f32 0.0, %v857
  %v859 = vpop.f32.mrf.mxu0
  %v860 = vadd.f32 0.0, %v859
  %861 = vmatmul.bf16.gmra.mxu0 %v103
  %v862 = vpop.f32.mrf.mxu0
  %v863 = vadd.f32 0.0, %v862
  %v864 = vpop.f32.mrf.mxu0
  %v865 = vadd.f32 0.0, %v864
  %866 = vmatmul.bf16.gmra.mxu0 %v104
  %v867 = vpop.f32.mrf.mxu0
  %v868 = vadd.f32 0.0, %v867
  %v869 = vpop.f32.mrf.mxu0
  %v870 = vadd.f32 0.0, %v869
  %871 = vmatmul.bf16.gmra.mxu0 %v105
  %v872 = vpop.f32.mrf.mxu0
  %v873 = vadd.f32 0.0, %v872
  %v874 = vpop.f32.mrf.mxu0
  %v875 = vadd.f32 0.0, %v874
  %876 = vmatmul.bf16.gmra.mxu0 %v106
  %v877 = vpop.f32.mrf.mxu0
  %v878 = vadd.f32 0.0, %v877
  %v879 = vpop.f32.mrf.mxu0
  %v880 = vadd.f32 0.0, %v879
  %881 = vmatmul.bf16.gmra.mxu0 %v107
  %v882 = vpop.f32.mrf.mxu0
  %v883 = vadd.f32 0.0, %v882
  %v884 = vpop.f32.mrf.mxu0
  %v885 = vadd.f32 0.0, %v884
  %886 = vmatmul.bf16.gmra.mxu0 %v108
  %v887 = vpop.f32.mrf.mxu0
  %v888 = vadd.f32 0.0, %v887
  %v889 = vpop.f32.mrf.mxu0
  %v890 = vadd.f32 0.0, %v889
  %891 = vmatmul.bf16.gmra.mxu0 %v109
  %v892 = vpop.f32.mrf.mxu0
  %v893 = vadd.f32 0.0, %v892
  %v894 = vpop.f32.mrf.mxu0
  %v895 = vadd.f32 0.0, %v894
  %896 = vdwg.mxu0
  %v897 = vpack.c.bf16 %v860, %v858
  %v898 = vpack.c.bf16 %v865, %v863
  %v899 = vpack.c.bf16 %v870, %v868
  %v900 = vpack.c.bf16 %v875, %v873
  %v901 = vpack.c.bf16 %v880, %v878
  %v902 = vpack.c.bf16 %v885, %v883
  %v903 = vpack.c.bf16 %v890, %v888
  %v904 = vpack.c.bf16 %v895, %v893
  %s905 = scalar_lea.vmem %s2, 128
  %v906 = vld [vmem:[%s905] sm:$0xf]
  %v907 = vld [vmem:[%s905 + $0x4] sm:$0xf]
  %v908 = vld [vmem:[%s905 + $0x8] sm:$0xf]
  %v909 = vld [vmem:[%s905 + $0xc] sm:$0xf]
  %v910 = vld [vmem:[%s905 + $0x10] sm:$0xf]
  %v911 = vld [vmem:[%s905 + $0x14] sm:$0xf]
  %v912 = vld [vmem:[%s905 + $0x18] sm:$0xf]
  %v913 = vld [vmem:[%s905 + $0x1c] sm:$0xf]
  %v914 = vld [vmem:[%s905 + $0x20] sm:$0xf]
  %v915 = vld [vmem:[%s905 + $0x24] sm:$0xf]
  %v916 = vld [vmem:[%s905 + $0x28] sm:$0xf]
  %v917 = vld [vmem:[%s905 + $0x2c] sm:$0xf]
  %v918 = vld [vmem:[%s905 + $0x30] sm:$0xf]
  %v919 = vld [vmem:[%s905 + $0x34] sm:$0xf]
  %v920 = vld [vmem:[%s905 + $0x38] sm:$0xf]
  %v921 = vld [vmem:[%s905 + $0x3c] sm:$0xf]
  %s922 = scalar_lea.vmem %s3, 2
  %v923 = vld [vmem:[%s922] sm:$0x1]
  %v925 = vperm.slane %v923, 0
  %v943 = vunpack.c.l.b16 %v906
  %v944 = vunpack.c.l.b16 %v907
  %v945 = vunpack.c.l.b16 %v908
  %v946 = vunpack.c.l.b16 %v909
  %v947 = vunpack.c.l.b16 %v910
  %v948 = vunpack.c.l.b16 %v911
  %v949 = vunpack.c.l.b16 %v912
  %v950 = vunpack.c.l.b16 %v913
  %v951 = vunpack.c.l.b16 %v914
  %v952 = vunpack.c.l.b16 %v915
  %v953 = vunpack.c.l.b16 %v916
  %v954 = vunpack.c.l.b16 %v917
  %v955 = vunpack.c.l.b16 %v918
  %v956 = vunpack.c.l.b16 %v919
  %v957 = vunpack.c.l.b16 %v920
  %v958 = vunpack.c.l.b16 %v921
  %v959 = vpack.c.b16 %v944, %v943
  %v960 = vpack.c.b16 %v946, %v945
  %v961 = vpack.c.b16 %v948, %v947
  %v962 = vpack.c.b16 %v950, %v949
  %v963 = vpack.c.b16 %v952, %v951
  %v964 = vpack.c.b16 %v954, %v953
  %v965 = vpack.c.b16 %v956, %v955
  %v966 = vpack.c.b16 %v958, %v957
  %975 = vmatpush.bf16.msra.mxu0 %v966
  %976 = vmatpush.bf16.msra.mxu0 %v965
  %977 = vmatpush.bf16.msra.mxu0 %v964
  %978 = vmatpush.bf16.msra.mxu0 %v963
  %979 = vmatpush.bf16.msra.mxu0 %v962
  %980 = vmatpush.bf16.msra.mxu0 %v961
  %981 = vmatpush.bf16.msra.mxu0 %v960
  %982 = vmatpush.bf16.msra.mxu0 %v959
  %983 = vmatmul.bf16.gmra.mxu0 %v897
  %v984 = vpop.f32.mrf.mxu0
  %v985 = vadd.f32 %v925, %v984
  %v986 = vpop.f32.mrf.mxu0
  %v987 = vadd.f32 %v925, %v986
  %988 = vmatmul.bf16.gmra.mxu0 %v898
  %v989 = vpop.f32.mrf.mxu0
  %v990 = vadd.f32 %v925, %v989
  %v991 = vpop.f32.mrf.mxu0
  %v992 = vadd.f32 %v925, %v991
  %993 = vmatmul.bf16.gmra.mxu0 %v899
  %v994 = vpop.f32.mrf.mxu0
  %v995 = vadd.f32 %v925, %v994
  %v996 = vpop.f32.mrf.mxu0
  %v997 = vadd.f32 %v925, %v996
  %998 = vmatmul.bf16.gmra.mxu0 %v900
  %v999 = vpop.f32.mrf.mxu0
  %v1000 = vadd.f32 %v925, %v999
  %v1001 = vpop.f32.mrf.mxu0
  %v1002 = vadd.f32 %v925, %v1001
  %1003 = vmatmul.bf16.gmra.mxu0 %v901
  %v1004 = vpop.f32.mrf.mxu0
  %v1005 = vadd.f32 %v925, %v1004
  %v1006 = vpop.f32.mrf.mxu0
  %v1007 = vadd.f32 %v925, %v1006
  %1008 = vmatmul.bf16.gmra.mxu0 %v902
  %v1009 = vpop.f32.mrf.mxu0
  %v1010 = vadd.f32 %v925, %v1009
  %v1011 = vpop.f32.mrf.mxu0
  %v1012 = vadd.f32 %v925, %v1011
  %1013 = vmatmul.bf16.gmra.mxu0 %v903
  %v1014 = vpop.f32.mrf.mxu0
  %v1015 = vadd.f32 %v925, %v1014
  %v1016 = vpop.f32.mrf.mxu0
  %v1017 = vadd.f32 %v925, %v1016
  %1018 = vmatmul.bf16.gmra.mxu0 %v904
  %v1019 = vpop.f32.mrf.mxu0
  %v1020 = vadd.f32 %v925, %v1019
  %v1021 = vpop.f32.mrf.mxu0
  %v1022 = vadd.f32 %v925, %v1021
  %1023 = vdwg.mxu0
  %v1024 = vmax.f32 %v985, 0.0
  %v1025 = vmax.f32 %v987, 0.0
  %v1026 = vmax.f32 %v990, 0.0
  %v1027 = vmax.f32 %v992, 0.0
  %v1028 = vmax.f32 %v995, 0.0
  %v1029 = vmax.f32 %v997, 0.0
  %v1030 = vmax.f32 %v1000, 0.0
  %v1031 = vmax.f32 %v1002, 0.0
  %v1032 = vmax.f32 %v1005, 0.0
  %v1033 = vmax.f32 %v1007, 0.0
  %v1034 = vmax.f32 %v1010, 0.0
  %v1035 = vmax.f32 %v1012, 0.0
  %v1036 = vmax.f32 %v1015, 0.0
  %v1037 = vmax.f32 %v1017, 0.0
  %v1038 = vmax.f32 %v1020, 0.0
  %v1039 = vmax.f32 %v1022, 0.0
  %v1040 = vpack.c.bf16 %v1025, %v1024
  %v1041 = vpack.c.bf16 %v1027, %v1026
  %v1042 = vpack.c.bf16 %v1029, %v1028
  %v1043 = vpack.c.bf16 %v1031, %v1030
  %v1044 = vpack.c.bf16 %v1033, %v1032
  %v1045 = vpack.c.bf16 %v1035, %v1034
  %v1046 = vpack.c.bf16 %v1037, %v1036
  %v1047 = vpack.c.bf16 %v1039, %v1038
  %s1048 = scalar_lea.vmem %s4, 128
  %v1049 = vld [vmem:[%s1048] sm:$0xf]
  %v1050 = vld [vmem:[%s1048 + $0x4] sm:$0xf]
  %v1051 = vld [vmem:[%s1048 + $0x8] sm:$0xf]
  %v1052 = vld [vmem:[%s1048 + $0xc] sm:$0xf]
  %v1053 = vld [vmem:[%s1048 + $0x10] sm:$0xf]
  %v1054 = vld [vmem:[%s1048 + $0x14] sm:$0xf]
  %v1055 = vld [vmem:[%s1048 + $0x18] sm:$0xf]
  %v1056 = vld [vmem:[%s1048 + $0x1c] sm:$0xf]
  %v1057 = vld [vmem:[%s1048 + $0x20] sm:$0xf]
  %v1058 = vld [vmem:[%s1048 + $0x24] sm:$0xf]
  %v1059 = vld [vmem:[%s1048 + $0x28] sm:$0xf]
  %v1060 = vld [vmem:[%s1048 + $0x2c] sm:$0xf]
  %v1061 = vld [vmem:[%s1048 + $0x30] sm:$0xf]
  %v1062 = vld [vmem:[%s1048 + $0x34] sm:$0xf]
  %v1063 = vld [vmem:[%s1048 + $0x38] sm:$0xf]
  %v1064 = vld [vmem:[%s1048 + $0x3c] sm:$0xf]
  %s1065 = scalar_lea.vmem %s5, 2
  %v1066 = vld [vmem:[%s1065] sm:$0x1]
  %v1068 = vperm.slane %v1066, 0
  %v1086 = vunpack.c.l.b16 %v1049
  %v1087 = vunpack.c.l.b16 %v1050
  %v1088 = vunpack.c.l.b16 %v1051
  %v1089 = vunpack.c.l.b16 %v1052
  %v1090 = vunpack.c.l.b16 %v1053
  %v1091 = vunpack.c.l.b16 %v1054
  %v1092 = vunpack.c.l.b16 %v1055
  %v1093 = vunpack.c.l.b16 %v1056
  %v1094 = vunpack.c.l.b16 %v1057
  %v1095 = vunpack.c.l.b16 %v1058
  %v1096 = vunpack.c.l.b16 %v1059
  %v1097 = vunpack.c.l.b16 %v1060
  %v1098 = vunpack.c.l.b16 %v1061
  %v1099 = vunpack.c.l.b16 %v1062
  %v1100 = vunpack.c.l.b16 %v1063
  %v1101 = vunpack.c.l.b16 %v1064
  %v1102 = vpack.c.b16 %v1087, %v1086
  %v1103 = vpack.c.b16 %v1089, %v1088
  %v1104 = vpack.c.b16 %v1091, %v1090
  %v1105 = vpack.c.b16 %v1093, %v1092
  %v1106 = vpack.c.b16 %v1095, %v1094
  %v1107 = vpack.c.b16 %v1097, %v1096
  %v1108 = vpack.c.b16 %v1099, %v1098
  %v1109 = vpack.c.b16 %v1101, %v1100
  %1118 = vmatpush.bf16.msra.mxu0 %v1109
  %1119 = vmatpush.bf16.msra.mxu0 %v1108
  %1120 = vmatpush.bf16.msra.mxu0 %v1107
  %1121 = vmatpush.bf16.msra.mxu0 %v1106
  %1122 = vmatpush.bf16.msra.mxu0 %v1105
  %1123 = vmatpush.bf16.msra.mxu0 %v1104
  %1124 = vmatpush.bf16.msra.mxu0 %v1103
  %1125 = vmatpush.bf16.msra.mxu0 %v1102
  %1126 = vmatmul.bf16.gmra.mxu0 %v1040
  %v1127 = vpop.f32.mrf.mxu0
  %v1128 = vadd.f32 %v1068, %v1127
  %v1129 = vpop.f32.mrf.mxu0
  %v1130 = vadd.f32 %v1068, %v1129
  %1131 = vmatmul.bf16.gmra.mxu0 %v1041
  %v1132 = vpop.f32.mrf.mxu0
  %v1133 = vadd.f32 %v1068, %v1132
  %v1134 = vpop.f32.mrf.mxu0
  %v1135 = vadd.f32 %v1068, %v1134
  %1136 = vmatmul.bf16.gmra.mxu0 %v1042
  %v1137 = vpop.f32.mrf.mxu0
  %v1138 = vadd.f32 %v1068, %v1137
  %v1139 = vpop.f32.mrf.mxu0
  %v1140 = vadd.f32 %v1068, %v1139
  %1141 = vmatmul.bf16.gmra.mxu0 %v1043
  %v1142 = vpop.f32.mrf.mxu0
  %v1143 = vadd.f32 %v1068, %v1142
  %v1144 = vpop.f32.mrf.mxu0
  %v1145 = vadd.f32 %v1068, %v1144
  %1146 = vmatmul.bf16.gmra.mxu0 %v1044
  %v1147 = vpop.f32.mrf.mxu0
  %v1148 = vadd.f32 %v1068, %v1147
  %v1149 = vpop.f32.mrf.mxu0
  %v1150 = vadd.f32 %v1068, %v1149
  %1151 = vmatmul.bf16.gmra.mxu0 %v1045
  %v1152 = vpop.f32.mrf.mxu0
  %v1153 = vadd.f32 %v1068, %v1152
  %v1154 = vpop.f32.mrf.mxu0
  %v1155 = vadd.f32 %v1068, %v1154
  %1156 = vmatmul.bf16.gmra.mxu0 %v1046
  %v1157 = vpop.f32.mrf.mxu0
  %v1158 = vadd.f32 %v1068, %v1157
  %v1159 = vpop.f32.mrf.mxu0
  %v1160 = vadd.f32 %v1068, %v1159
  %1161 = vmatmul.bf16.gmra.mxu0 %v1047
  %v1162 = vpop.f32.mrf.mxu0
  %v1163 = vadd.f32 %v1068, %v1162
  %v1164 = vpop.f32.mrf.mxu0
  %v1165 = vadd.f32 %v1068, %v1164
  %1166 = vdwg.mxu0
  %v1167 = vmax.f32 %v1128, 0.0
  %v1168 = vmax.f32 %v1130, 0.0
  %v1169 = vmax.f32 %v1133, 0.0
  %v1170 = vmax.f32 %v1135, 0.0
  %v1171 = vmax.f32 %v1138, 0.0
  %v1172 = vmax.f32 %v1140, 0.0
  %v1173 = vmax.f32 %v1143, 0.0
  %v1174 = vmax.f32 %v1145, 0.0
  %v1175 = vmax.f32 %v1148, 0.0
  %v1176 = vmax.f32 %v1150, 0.0
  %v1177 = vmax.f32 %v1153, 0.0
  %v1178 = vmax.f32 %v1155, 0.0
  %v1179 = vmax.f32 %v1158, 0.0
  %v1180 = vmax.f32 %v1160, 0.0
  %v1181 = vmax.f32 %v1163, 0.0
  %v1182 = vmax.f32 %v1165, 0.0
  %v1183 = vpack.c.bf16 %v1168, %v1167
  %v1184 = vpack.c.bf16 %v1170, %v1169
  %v1185 = vpack.c.bf16 %v1172, %v1171
  %v1186 = vpack.c.bf16 %v1174, %v1173
  %v1187 = vpack.c.bf16 %v1176, %v1175
  %v1188 = vpack.c.bf16 %v1178, %v1177
  %v1189 = vpack.c.bf16 %v1180, %v1179
  %v1190 = vpack.c.bf16 %v1182, %v1181
  %v1191 = vld [vmem:[%s6] sm:$0xf]
  %1192 = vmatpush.bf16.msra.mxu0 %v1190
  %1193 = vmatpush.bf16.msra.mxu0 %v1189
  %1194 = vmatpush.bf16.msra.mxu0 %v1188
  %1195 = vmatpush.bf16.msra.mxu0 %v1187
  %1196 = vmatpush.bf16.msra.mxu0 %v1186
  %1197 = vmatpush.bf16.msra.mxu0 %v1185
  %1198 = vmatpush.bf16.msra.mxu0 %v1184
  %1199 = vmatpush.bf16.msra.mxu0 %v1183
  %1200 = vmatmul.bf16.gmra.mxu0 %v1191
  %v1201 = vpop.f32.mrf.mxu0
  %v1202 = vadd.f32 0.0, %v1201
  %v1203 = vpop.f32.mrf.mxu0
  %1204 = vdwg.mxu0
  %v1205 = vpack.c.bf16 %v1202, %v1202
  %v1206 = vld [vmem:[%s7] sm:$0xf]
  %v1207 = vld [vmem:[%s7 + $0x4] sm:$0xf]
  %v1208 = vld [vmem:[%s7 + $0x8] sm:$0xf]
  %v1209 = vld [vmem:[%s7 + $0xc] sm:$0xf]
  %v1210 = vld [vmem:[%s7 + $0x10] sm:$0xf]
  %v1211 = vld [vmem:[%s7 + $0x14] sm:$0xf]
  %v1212 = vld [vmem:[%s7 + $0x18] sm:$0xf]
  %v1213 = vld [vmem:[%s7 + $0x1c] sm:$0xf]
  %v1214 = vld [vmem:[%s7 + $0x20] sm:$0xf]
  %v1215 = vld [vmem:[%s7 + $0x24] sm:$0xf]
  %v1216 = vld [vmem:[%s7 + $0x28] sm:$0xf]
  %v1217 = vld [vmem:[%s7 + $0x2c] sm:$0xf]
  %v1218 = vld [vmem:[%s7 + $0x30] sm:$0xf]
  %v1219 = vld [vmem:[%s7 + $0x34] sm:$0xf]
  %v1220 = vld [vmem:[%s7 + $0x38] sm:$0xf]
  %v1221 = vld [vmem:[%s7 + $0x3c] sm:$0xf]
  %v1222 = vld [vmem:[%s8] sm:$0x1]
  %v1224 = vperm.slane %v1222, 0
  %v1242 = vunpack.c.l.b16 %v1206
  %v1243 = vunpack.c.l.b16 %v1207
  %v1244 = vunpack.c.l.b16 %v1208
  %v1245 = vunpack.c.l.b16 %v1209
  %v1246 = vunpack.c.l.b16 %v1210
  %v1247 = vunpack.c.l.b16 %v1211
  %v1248 = vunpack.c.l.b16 %v1212
  %v1249 = vunpack.c.l.b16 %v1213
  %v1250 = vunpack.c.l.b16 %v1214
  %v1251 = vunpack.c.l.b16 %v1215
  %v1252 = vunpack.c.l.b16 %v1216
  %v1253 = vunpack.c.l.b16 %v1217
  %v1254 = vunpack.c.l.b16 %v1218
  %v1255 = vunpack.c.l.b16 %v1219
  %v1256 = vunpack.c.l.b16 %v1220
  %v1257 = vunpack.c.l.b16 %v1221
  %v1258 = vpack.c.b16 %v1243, %v1242
  %v1259 = vpack.c.b16 %v1245, %v1244
  %v1260 = vpack.c.b16 %v1247, %v1246
  %v1261 = vpack.c.b16 %v1249, %v1248
  %v1262 = vpack.c.b16 %v1251, %v1250
  %v1263 = vpack.c.b16 %v1253, %v1252
  %v1264 = vpack.c.b16 %v1255, %v1254
  %v1265 = vpack.c.b16 %v1257, %v1256
  %1274 = vmatpush.bf16.msra.mxu0 %v1265
  %1275 = vmatpush.bf16.msra.mxu0 %v1264
  %1276 = vmatpush.bf16.msra.mxu0 %v1263
  %1277 = vmatpush.bf16.msra.mxu0 %v1262
  %1278 = vmatpush.bf16.msra.mxu0 %v1261
  %1279 = vmatpush.bf16.msra.mxu0 %v1260
  %1280 = vmatpush.bf16.msra.mxu0 %v1259
  %1281 = vmatpush.bf16.msra.mxu0 %v1258
  %1282 = vmatmul.bf16.gmra.mxu0 %v1205
  %v1283 = vpop.f32.mrf.mxu0
  %v1284 = vadd.f32 %v1224, %v1283
  %v1285 = vpop.f32.mrf.mxu0
  %1286 = vdwg.mxu0
  %v1287 = vmax.f32 %v1284, 0.0
  %v1288 = vpack.c.bf16 %v1287, %v1287
  %v1289 = vld [vmem:[%s9] sm:$0xf]
  %v1290 = vld [vmem:[%s9 + $0x4] sm:$0xf]
  %v1291 = vld [vmem:[%s9 + $0x8] sm:$0xf]
  %v1292 = vld [vmem:[%s9 + $0xc] sm:$0xf]
  %v1293 = vld [vmem:[%s9 + $0x10] sm:$0xf]
  %v1294 = vld [vmem:[%s9 + $0x14] sm:$0xf]
  %v1295 = vld [vmem:[%s9 + $0x18] sm:$0xf]
  %v1296 = vld [vmem:[%s9 + $0x1c] sm:$0xf]
  %v1297 = vld [vmem:[%s9 + $0x20] sm:$0xf]
  %v1298 = vld [vmem:[%s9 + $0x24] sm:$0xf]
  %v1299 = vld [vmem:[%s9 + $0x28] sm:$0xf]
  %v1300 = vld [vmem:[%s9 + $0x2c] sm:$0xf]
  %v1301 = vld [vmem:[%s9 + $0x30] sm:$0xf]
  %v1302 = vld [vmem:[%s9 + $0x34] sm:$0xf]
  %v1303 = vld [vmem:[%s9 + $0x38] sm:$0xf]
  %v1304 = vld [vmem:[%s9 + $0x3c] sm:$0xf]
  %v1305 = vld [vmem:[%s10] sm:$0x1]
  %v1307 = vperm.slane %v1305, 0
  %v1325 = vunpack.c.l.b16 %v1289
  %v1326 = vunpack.c.l.b16 %v1290
  %v1327 = vunpack.c.l.b16 %v1291
  %v1328 = vunpack.c.l.b16 %v1292
  %v1329 = vunpack.c.l.b16 %v1293
  %v1330 = vunpack.c.l.b16 %v1294
  %v1331 = vunpack.c.l.b16 %v1295
  %v1332 = vunpack.c.l.b16 %v1296
  %v1333 = vunpack.c.l.b16 %v1297
  %v1334 = vunpack.c.l.b16 %v1298
  %v1335 = vunpack.c.l.b16 %v1299
  %v1336 = vunpack.c.l.b16 %v1300
  %v1337 = vunpack.c.l.b16 %v1301
  %v1338 = vunpack.c.l.b16 %v1302
  %v1339 = vunpack.c.l.b16 %v1303
  %v1340 = vunpack.c.l.b16 %v1304
  %v1341 = vpack.c.b16 %v1326, %v1325
  %v1342 = vpack.c.b16 %v1328, %v1327
  %v1343 = vpack.c.b16 %v1330, %v1329
  %v1344 = vpack.c.b16 %v1332, %v1331
  %v1345 = vpack.c.b16 %v1334, %v1333
  %v1346 = vpack.c.b16 %v1336, %v1335
  %v1347 = vpack.c.b16 %v1338, %v1337
  %v1348 = vpack.c.b16 %v1340, %v1339
  %1357 = vmatpush.bf16.msra.mxu0 %v1348
  %1358 = vmatpush.bf16.msra.mxu0 %v1347
  %1359 = vmatpush.bf16.msra.mxu0 %v1346
  %1360 = vmatpush.bf16.msra.mxu0 %v1345
  %1361 = vmatpush.bf16.msra.mxu0 %v1344
  %1362 = vmatpush.bf16.msra.mxu0 %v1343
  %1363 = vmatpush.bf16.msra.mxu0 %v1342
  %1364 = vmatpush.bf16.msra.mxu0 %v1341
  %1365 = vmatmul.bf16.gmra.mxu0 %v1288
  %v1366 = vpop.f32.mrf.mxu0
  %v1367 = vadd.f32 %v1307, %v1366
  %v1368 = vpop.f32.mrf.mxu0
  %1369 = vdwg.mxu0
  %1370 = vst [vmem:[%s11] sm:$0xff] %v1367
  // Predicated region
  $region46: #{net_forward.1} parent=0 // pred_check
    _
  $region47: #{net_forward.1} parent=0 // pred_check_branch
    %1372 = sbr.rel (0) target = $region49
  $region48: #{net_forward.1} parent=0 // pred_region
    _
  $region49: #{net_forward.1} parent=0 // pred_fallthru
    _
  // Predicated region
  $region50: #{net_forward.1} parent=0 // pred_check
    _
  $region51: #{net_forward.1} parent=0 // pred_check_branch
    %1374 = sbr.rel (0) target = $region53
  $region52: #{net_forward.1} parent=0 // pred_region
    _
  $region53: #{net_forward.1} parent=0 // pred_fallthru
    _

</llo_original>
